<compile_context>
chip_gen: v7x
topology: tpu7x:2x2x1
jax: 0.10.0
libtpu: 0.0.40
codegen_flags: <defaults>
</compile_context>

<pallas_src>
import jax
import jax.numpy as jnp
from jax import lax
from jax.experimental import pallas as pl
from jax.experimental.pallas import tpu as pltpu


def _round_up(x, m):
    return ((x + m - 1) // m) * m


def _make_mlp_kernel(num_hidden: int, compute_dtype):
    """Fused MLP kernel: `num_hidden` (Linear + LeakyReLU) layers + sigmoid head."""

    def kernel(*refs):
        x_ref = refs[0]            # (tb, D_in)  caller dtype, batch on sublanes
        o_ref = refs[-1]           # (1, tb)     f32, lane-dense output block
        p = refs[1:-1]             # (W1, b1, ..., Wk, bk, w_head, b_head)

        x = x_ref[...].astype(compute_dtype)   # MXU operand (bf16 or f32)
        h = None                   # (H_i, tb) compute-dtype activation
        a = None                   # (H_i, tb) f32 activation feeding the head
        for i in range(num_hidden):
            w = p[2 * i][...]      # (H_out, H_in) compute dtype (torch layout)
            b = p[2 * i + 1][...]  # (H_out, 1)    f32
            if i == 0:
                # Contract the feature axis of the untransposed x tile:
                # (H_out, D) . (tb, D) -> (H_out, tb).  Keeps activations
                # lane-dense without any wrapper-side transpose of x in HBM.
                z = lax.dot_general(
                    w, x, (((1,), (1,)), ((), ())),
                    preferred_element_type=jnp.float32)
            else:
                z = jnp.dot(w, h, preferred_element_type=jnp.float32)
            z = z + b
            # LeakyReLU(0.2) on the f32 accumulator (VPU, f32 on all gens).
            z = jnp.where(z > 0, z, 0.2 * z)
            # Dropout(0.2): identity at inference.
            a = z
            h = z.astype(w.dtype)  # next-layer MXU operand at compute dtype
        if a is None:
            # No hidden layers: head acts on x directly (lane-dense layout).
            a = x_ref[...].astype(jnp.float32).T

        # N=1 classification head: VPU multiply + cross-sublane (XLU) reduce
        # instead of an MXU matmul with a single live output column.
        w_head = p[-2][...].astype(jnp.float32)   # (H_last, 1)
        b_head = p[-1][...].astype(jnp.float32)   # (1, 1)
        logits = jnp.sum(a * w_head, axis=0, keepdims=True) + b_head   # (1, tb)

        # Sigmoid: exp lands on the EUP; accurate f32 divide (cheap at (1, tb)).
        o_ref[...] = (1.0 / (1.0 + jnp.exp(-logits))).astype(o_ref.dtype)

    return kernel


def discriminator_forward(x, params, *, batch_tile=None,
                          compute_dtype=jnp.bfloat16):
    """Runs the fused discriminator MLP.

    Args:
      x: [B, input_dim] embeddings (f32 or bf16; consumed as-is, no HBM pre-pass).
      params: list of (W, b) pairs in math layout; W: [in_dim, out_dim], b: [out_dim].
              The last pair has out_dim == 1 (classification head).
      batch_tile: rows per grid step; must be a multiple of 128 (lane-dense).
      compute_dtype: dtype for x / hidden weights fed to the MXU (bf16 or f32).
    Returns:
      [B, 1] float32 sigmoid scores.
    """
    B, D = x.shape
    num_hidden = len(params) - 1

    if batch_tile is None:
        if B <= 128:
            tb = 128
        else:
            # Large tile amortizes the ~0.35us/step pipeline overhead; capping
            # at ceil(B/2) keeps the grid length >= 2 so both v7x TensorCores
            # get work.  The 8192 cap keeps per-step VMEM well under the 16 MiB
            # v5e scoped default.
            tb = min(8192, _round_up(-(-B // 2), 128))
    else:
        tb = int(batch_tile)
    assert tb % 128 == 0, "batch_tile must be a multiple of 128 (lane-dense)"

    grid_len = pl.cdiv(B, tb)
    Bp = grid_len * tb   # padded OUTPUT columns only; x itself is never copied

    # x read untransposed: block (tb, D), last block may read OOB rows whose
    # garbage stays confined to its own (padded) batch lanes.
    in_specs = [pl.BlockSpec((tb, D), lambda i: (i, 0))]
    flat_params = []
    for li, (w, b) in enumerate(params):
        out_dim = w.shape[1]
        if li < num_hidden:
            # Hidden layers run as W @ h (torch nn.Linear [out, in] layout).
            w_arr = jnp.asarray(w, jnp.float32).T.astype(compute_dtype)
        else:
            # Head weight stays an f32 column vector for the VPU/XLU reduction.
            w_arr = jnp.asarray(w, jnp.float32)
        b_arr = jnp.asarray(b, jnp.float32).reshape(out_dim, 1)  # biases stay f32
        # Parameters are tiny and grid-invariant: full-array blocks with a
        # constant index_map, so the pipeline never re-fetches them.
        in_specs.append(pl.BlockSpec(w_arr.shape, lambda i: (0, 0)))
        in_specs.append(pl.BlockSpec(b_arr.shape, lambda i: (0, 0)))
        flat_params.extend([w_arr, b_arr])

    out_spec = pl.BlockSpec((1, tb), lambda i: (0, i))

    out_t = pl.pallas_call(
        _make_mlp_kernel(num_hidden, compute_dtype),
        out_shape=jax.ShapeDtypeStruct((1, Bp), jnp.float32),
        grid_spec=pltpu.PrefetchScalarGridSpec(
            num_scalar_prefetch=0,
            grid=(grid_len,),
            in_specs=in_specs,
            out_specs=out_spec,
        ),
        compiler_params=pltpu.CompilerParams(
            dimension_semantics=("parallel",),
        ),
    )(x, *flat_params)

    return out_t[0, :B].reshape(B, 1)


def init_discriminator_params(key, input_dim, hidden_dims):
    """Deterministic parameter init matching the PyTorch module's shapes."""
    params = []
    prev = input_dim
    for d in list(hidden_dims) + [1]:
        key, kw, kb = jax.random.split(key, 3)
        w = 0.05 * jax.random.normal(kw, (prev, d), dtype=jnp.float32)
        b = 0.05 * jax.random.normal(kb, (d,), dtype=jnp.float32)
        params.append((w, b))
        prev = d
    return params


def discriminator_reference(x, params):
    """Pure-JAX reference of the same forward pass (for sanity checking)."""
    h = x
    for (w, b) in params[:-1]:
        h = h @ w + b
        h = jnp.where(h > 0, h, 0.2 * h)
    w, b = params[-1]
    return jax.nn.sigmoid(h @ w + b)


if __name__ == "__main__":
    key = jax.random.PRNGKey(0)
    k_x, k_p, k_x2 = jax.random.split(key, 3)

    input_dim = 32
    hidden_dims = [64, 32]
    params = init_discriminator_params(k_p, input_dim, hidden_dims)

    # Small-shape f32 check (single grid step, block larger than the batch).
    batch = 8
    x = jax.random.normal(k_x, (batch, input_dim), dtype=jnp.float32)
    out = jax.block_until_ready(
        discriminator_forward(x, params, compute_dtype=jnp.float32))
    ref = discriminator_reference(x, params)
    assert out.shape == (batch, 1)
    assert jnp.allclose(out, ref, atol=1e-4, rtol=1e-4), float(
        jnp.max(jnp.abs(out - ref)))

    # Multi-tile grid (>=2 steps for v7x), ragged last block, default bf16 MXU
    # path (valid on v5e/v6e/v7x), no wrapper-side pass over x.
    batch2 = 300
    x2 = jax.random.normal(k_x2, (batch2, input_dim), dtype=jnp.float32)
    out2 = jax.block_until_ready(discriminator_forward(x2, params))
    ref2 = discriminator_reference(x2, params)
    assert out2.shape == (batch2, 1)
    assert jnp.allclose(out2, ref2, atol=2e-2, rtol=2e-2), float(
        jnp.max(jnp.abs(out2 - ref2)))

    print("KERNEL_OK")
</pallas_src>

<mosaic_0001>
module attributes {stable_mosaic.version = 11 : i64} {
  func.func @kernel(%arg0: i32, %arg1: memref<128x32xf32, #tpu.memory_space<vmem>>, %arg2: memref<64x32xf32, #tpu.memory_space<vmem>>, %arg3: memref<64x1xf32, #tpu.memory_space<vmem>>, %arg4: memref<32x64xf32, #tpu.memory_space<vmem>>, %arg5: memref<32x1xf32, #tpu.memory_space<vmem>>, %arg6: memref<32x1xf32, #tpu.memory_space<vmem>>, %arg7: memref<1x1xf32, #tpu.memory_space<vmem>>, %arg8: memref<1x128xf32, #tpu.memory_space<vmem>>) attributes {dimension_semantics = [#tpu.dimension_semantics<parallel>], iteration_bounds = array<i64: 1>, scalar_prefetch = 0 : i64, scratch_operands = 0 : i64, tpu.core_type = #tpu.core_type<tc>, window_params = [{transform_indices = @transform_0, window_bounds = array<i64: 128, 32>}, {pipeline_mode = #tpu.pipeline_mode<synchronous>, transform_indices = @transform_1, window_bounds = array<i64: 64, 32>}, {pipeline_mode = #tpu.pipeline_mode<synchronous>, transform_indices = @transform_2, window_bounds = array<i64: 64, 1>}, {pipeline_mode = #tpu.pipeline_mode<synchronous>, transform_indices = @transform_3, window_bounds = array<i64: 32, 64>}, {pipeline_mode = #tpu.pipeline_mode<synchronous>, transform_indices = @transform_4, window_bounds = array<i64: 32, 1>}, {pipeline_mode = #tpu.pipeline_mode<synchronous>, transform_indices = @transform_5, window_bounds = array<i64: 32, 1>}, {pipeline_mode = #tpu.pipeline_mode<synchronous>, transform_indices = @transform_6, window_bounds = array<i64: 1, 1>}, {transform_indices = @transform_7, window_bounds = array<i64: 1, 128>}]} {
    %c0 = arith.constant 0 : index
    %c0_0 = arith.constant 0 : index
    %0 = vector.load %arg1[%c0, %c0_0] : memref<128x32xf32, #tpu.memory_space<vmem>>, vector<128x32xf32>
    %c0_1 = arith.constant 0 : index
    %c0_2 = arith.constant 0 : index
    %1 = vector.load %arg2[%c0_1, %c0_2] : memref<64x32xf32, #tpu.memory_space<vmem>>, vector<64x32xf32>
    %c0_3 = arith.constant 0 : index
    %c0_4 = arith.constant 0 : index
    %2 = vector.load %arg3[%c0_3, %c0_4] : memref<64x1xf32, #tpu.memory_space<vmem>>, vector<64x1xf32>
    %cst = arith.constant dense<0.000000e+00> : vector<64x128xf32>
    %3 = tpu.matmul %1, %0, %cst {dimension_numbers = #tpu.dot_dimension_numbers<[1], [1], [0], [0], [0, 0, 1, 0], [], []>} : vector<64x32xf32>, vector<128x32xf32>, vector<64x128xf32> -> vector<64x128xf32>
    %4 = vector.broadcast %2 : vector<64x1xf32> to vector<64x128xf32>
    %5 = arith.addf %3, %4 : vector<64x128xf32>
    %cst_5 = arith.constant 0.000000e+00 : f32
    %6 = vector.broadcast %cst_5 : f32 to vector<64x128xf32>
    %7 = arith.cmpf ogt, %5, %6 : vector<64x128xf32>
    %cst_6 = arith.constant 2.000000e-01 : f32
    %8 = vector.broadcast %cst_6 : f32 to vector<64x128xf32>
    %9 = arith.mulf %8, %5 : vector<64x128xf32>
    %10 = arith.select %7, %5, %9 : vector<64x128xi1>, vector<64x128xf32>
    %c0_7 = arith.constant 0 : index
    %c0_8 = arith.constant 0 : index
    %11 = vector.load %arg4[%c0_7, %c0_8] : memref<32x64xf32, #tpu.memory_space<vmem>>, vector<32x64xf32>
    %c0_9 = arith.constant 0 : index
    %c0_10 = arith.constant 0 : index
    %12 = vector.load %arg5[%c0_9, %c0_10] : memref<32x1xf32, #tpu.memory_space<vmem>>, vector<32x1xf32>
    %cst_11 = arith.constant dense<0.000000e+00> : vector<32x128xf32>
    %13 = tpu.matmul %11, %10, %cst_11 {dimension_numbers = #tpu.dot_dimension_numbers<[1], [0], [0], [1], [0, 0, 1, 1], [], []>} : vector<32x64xf32>, vector<64x128xf32>, vector<32x128xf32> -> vector<32x128xf32>
    %14 = vector.broadcast %12 : vector<32x1xf32> to vector<32x128xf32>
    %15 = arith.addf %13, %14 : vector<32x128xf32>
    %cst_12 = arith.constant 0.000000e+00 : f32
    %16 = vector.broadcast %cst_12 : f32 to vector<32x128xf32>
    %17 = arith.cmpf ogt, %15, %16 : vector<32x128xf32>
    %cst_13 = arith.constant 2.000000e-01 : f32
    %18 = vector.broadcast %cst_13 : f32 to vector<32x128xf32>
    %19 = arith.mulf %18, %15 : vector<32x128xf32>
    %20 = arith.select %17, %15, %19 : vector<32x128xi1>, vector<32x128xf32>
    %c0_14 = arith.constant 0 : index
    %c0_15 = arith.constant 0 : index
    %21 = vector.load %arg6[%c0_14, %c0_15] : memref<32x1xf32, #tpu.memory_space<vmem>>, vector<32x1xf32>
    %c0_16 = arith.constant 0 : index
    %c0_17 = arith.constant 0 : index
    %22 = vector.load %arg7[%c0_16, %c0_17] : memref<1x1xf32, #tpu.memory_space<vmem>>, vector<1x1xf32>
    %23 = vector.broadcast %21 : vector<32x1xf32> to vector<32x128xf32>
    %24 = arith.mulf %20, %23 : vector<32x128xf32>
    %cst_18 = arith.constant dense<0.000000e+00> : vector<128xf32>
    %25 = vector.multi_reduction <add>, %24, %cst_18 [0] : vector<32x128xf32> to vector<128xf32>
    %26 = vector.shape_cast %25 : vector<128xf32> to vector<1x128xf32>
    %27 = vector.broadcast %22 : vector<1x1xf32> to vector<1x128xf32>
    %28 = arith.addf %26, %27 : vector<1x128xf32>
    %cst_19 = arith.constant 0.000000e+00 : f32
    %29 = vector.broadcast %cst_19 : f32 to vector<1x128xf32>
    %30 = arith.subf %29, %28 : vector<1x128xf32>
    %31 = math.exp %30 : vector<1x128xf32>
    %cst_20 = arith.constant 1.000000e+00 : f32
    %32 = vector.broadcast %cst_20 : f32 to vector<1x128xf32>
    %33 = arith.addf %32, %31 : vector<1x128xf32>
    %cst_21 = arith.constant 1.000000e+00 : f32
    %34 = vector.broadcast %cst_21 : f32 to vector<1x128xf32>
    %35 = arith.divf %34, %33 : vector<1x128xf32>
    %c0_22 = arith.constant 0 : index
    %c0_23 = arith.constant 0 : index
    %36 = vector.load %arg8[%c0_22, %c0_23] : memref<1x128xf32, #tpu.memory_space<vmem>>, vector<1x128xf32>
    tpu.vector_store %arg8[%c0_22, %c0_23], %35 {strides = array<i32>} : memref<1x128xf32, #tpu.memory_space<vmem>>, vector<1x128xf32>,
    return
  }
  func.func @transform_0(%arg0: i32) -> (i32, i32) {
    %c0_i32 = arith.constant 0 : i32
    %c0_i32_0 = arith.constant 0 : i32
    return %arg0, %c0_i32 : i32, i32
  }
  func.func @transform_1(%arg0: i32) -> (i32, i32) {
    %c0_i32 = arith.constant 0 : i32
    %c0_i32_0 = arith.constant 0 : i32
    %c0_i32_1 = arith.constant 0 : i32
    return %c0_i32, %c0_i32_0 : i32, i32
  }
  func.func @transform_2(%arg0: i32) -> (i32, i32) {
    %c0_i32 = arith.constant 0 : i32
    %c0_i32_0 = arith.constant 0 : i32
    %c0_i32_1 = arith.constant 0 : i32
    return %c0_i32, %c0_i32_0 : i32, i32
  }
  func.func @transform_3(%arg0: i32) -> (i32, i32) {
    %c0_i32 = arith.constant 0 : i32
    %c0_i32_0 = arith.constant 0 : i32
    %c0_i32_1 = arith.constant 0 : i32
    return %c0_i32, %c0_i32_0 : i32, i32
  }
  func.func @transform_4(%arg0: i32) -> (i32, i32) {
    %c0_i32 = arith.constant 0 : i32
    %c0_i32_0 = arith.constant 0 : i32
    %c0_i32_1 = arith.constant 0 : i32
    return %c0_i32, %c0_i32_0 : i32, i32
  }
  func.func @transform_5(%arg0: i32) -> (i32, i32) {
    %c0_i32 = arith.constant 0 : i32
    %c0_i32_0 = arith.constant 0 : i32
    %c0_i32_1 = arith.constant 0 : i32
    return %c0_i32, %c0_i32_0 : i32, i32
  }
  func.func @transform_6(%arg0: i32) -> (i32, i32) {
    %c0_i32 = arith.constant 0 : i32
    %c0_i32_0 = arith.constant 0 : i32
    %c0_i32_1 = arith.constant 0 : i32
    return %c0_i32, %c0_i32_0 : i32, i32
  }
  func.func @transform_7(%arg0: i32) -> (i32, i32) {
    %c0_i32 = arith.constant 0 : i32
    %c0_i32_0 = arith.constant 0 : i32
    return %c0_i32, %arg0 : i32, i32
  }
}

</mosaic_0001>

<llo_original>
// kernel: tpu_custom_call.1
$region0: #{tpu_custom_call.1}
  #allocation0 [shape = 'u32[]', space=smem, size = 0x4, offset = 0x4, fixed_abs, tag = 'smem constant byte address 0x4 - core index']
  #allocation1 [shape = 'u32[144,128]{1,0:T(1,128)}', space=vmem, size = 0x12000, scoped, tag = 'internal scratch']
  #allocation2 [shape = 'f32[1,1]{1,0:T(1,128)S(1)}', space=vmem, size = 0x200, scoped, tag = 'scoped memory for tpu_custom_call.1']
  %s0 = inlined_call_operand.vmem [shape: f32[8,32], index: 0, kind: input, shape index: {}]
  %s1 = inlined_call_operand.vmem [shape: f32[64,32], index: 1, kind: input, shape index: {}]
  %s2 = inlined_call_operand.vmem [shape: f32[64,1], index: 2, kind: input, shape index: {}]
  %s3 = inlined_call_operand.vmem [shape: f32[32,64], index: 3, kind: input, shape index: {}]
  %s4 = inlined_call_operand.vmem [shape: f32[32,1], index: 4, kind: input, shape index: {}]
  %s5 = inlined_call_operand.vmem [shape: f32[32,1], index: 5, kind: input, shape index: {}]
  %s6 = inlined_call_operand.<no memory space> [shape: f32[1,1], index: 6, kind: input, shape index: {}]
  %s7 = inlined_call_operand.hbm [shape: f32[1,128], index: 7, kind: output, shape index: {}]
  %s8 = sld [smem:[#allocation0]]
  $region38: #{tpu_custom_call.1} parent=0
    _
  %s10 = ssub.s32 1, %s8
  %s11 = scalar_select 0, %s10, %s8
  %v12 = vstv %s6
  %13 = vst [vmem:[#allocation2] sm:$0x1] %v12
  $region1: #{tpu_custom_call.1} parent=0
    #allocation3 [shape = 'u8[512]{0}', space=vmem, size = 0x400, scoped, tag = 'output window, operand 0, single buffered']
    #allocation4 [shape = 's32[1]{0}', space=sflag, size = 0x4, scoped, tag = 'scoped memory for tpu_custom_call.1']
    %14 = vsyncpa [#allocation4], 0
    // Predicated region
    $region2: #{tpu_custom_call.1} parent=1 // pred_check
      _
    $region3: #{tpu_custom_call.1} parent=1 // pred_check_branch
      %16 = sbr.rel (0) target = $region5
    $region4: #{tpu_custom_call.1} parent=1 // pred_region
      _
    $region5: #{tpu_custom_call.1} parent=1 // pred_fallthru
      _
    // Predicated region
    $region6: #{tpu_custom_call.1} parent=1 // pred_check
      _
    $region7: #{tpu_custom_call.1} parent=1 // pred_check_branch
      %18 = sbr.rel (0) target = $region9
    $region8: #{tpu_custom_call.1} parent=1 // pred_region
      _
    $region9: #{tpu_custom_call.1} parent=1 // pred_fallthru
      _
    // Predicated region
    $region10: #{tpu_custom_call.1} parent=1 // pred_check
      _
    $region11: #{tpu_custom_call.1} parent=1 // pred_check_branch
      %20 = sbr.rel (0) target = $region13
    $region12: #{tpu_custom_call.1} parent=1 // pred_region
      _
    $region13: #{tpu_custom_call.1} parent=1 // pred_fallthru
      _
    // Predicated region
    $region14: #{tpu_custom_call.1} parent=1 // pred_check
      _
    $region15: #{tpu_custom_call.1} parent=1 // pred_check_branch
      %22 = sbr.rel (0) target = $region17
    $region16: #{tpu_custom_call.1} parent=1 // pred_region
      _
    $region17: #{tpu_custom_call.1} parent=1 // pred_fallthru
      _
    // Predicated region
    $region18: #{tpu_custom_call.1} parent=1 // pred_check
      _
    $region19: #{tpu_custom_call.1} parent=1 // pred_check_branch
      %24 = sbr.rel (0) target = $region21
    $region20: #{tpu_custom_call.1} parent=1 // pred_region
      _
    $region21: #{tpu_custom_call.1} parent=1 // pred_fallthru
      _
    // Predicated region
    $region22: #{tpu_custom_call.1} parent=1 // pred_check
      _
    $region23: #{tpu_custom_call.1} parent=1 // pred_check_branch
      %26 = sbr.rel (0) target = $region25
    $region24: #{tpu_custom_call.1} parent=1 // pred_region
      _
    $region25: #{tpu_custom_call.1} parent=1 // pred_fallthru
      _
    // Predicated region
    $region26: #{tpu_custom_call.1} parent=1 // pred_check
      _
    $region27: #{tpu_custom_call.1} parent=1 // pred_check_branch
      %28 = sbr.rel (0) target = $region29
    $region28: #{tpu_custom_call.1} parent=1 // pred_region
      _
    $region29: #{tpu_custom_call.1} parent=1 // pred_fallthru
      _
    %v29 = vld [vmem:[%s0] sm:$0xff]
    %v30 = vld [vmem:[%s0 + $0x8] sm:$0xff]
    %v31 = vld [vmem:[%s0 + $0x10] sm:$0xff]
    %v32 = vld [vmem:[%s0 + $0x18] sm:$0xff]
    %v33 = vld [vmem:[%s0 + $0x20] sm:$0xff]
    %v34 = vld [vmem:[%s0 + $0x28] sm:$0xff]
    %v35 = vld [vmem:[%s0 + $0x30] sm:$0xff]
    %v36 = vld [vmem:[%s0 + $0x38] sm:$0xff]
    %v37 = vld [vmem:[%s0 + $0x40] sm:$0xff]
    %v38 = vld [vmem:[%s0 + $0x48] sm:$0xff]
    %v39 = vld [vmem:[%s0 + $0x50] sm:$0xff]
    %v40 = vld [vmem:[%s0 + $0x58] sm:$0xff]
    %v41 = vld [vmem:[%s0 + $0x60] sm:$0xff]
    %v42 = vld [vmem:[%s0 + $0x68] sm:$0xff]
    %v43 = vld [vmem:[%s0 + $0x70] sm:$0xff]
    %v44 = vld [vmem:[%s0 + $0x78] sm:$0xff]
    %v45 = vld [vmem:[%s1] sm:$0xff]
    %v46 = vld [vmem:[%s1 + $0x8] sm:$0xff]
    %v47 = vld [vmem:[%s1 + $0x10] sm:$0xff]
    %v48 = vld [vmem:[%s1 + $0x18] sm:$0xff]
    %v49 = vld [vmem:[%s1 + $0x20] sm:$0xff]
    %v50 = vld [vmem:[%s1 + $0x28] sm:$0xff]
    %v51 = vld [vmem:[%s1 + $0x30] sm:$0xff]
    %v52 = vld [vmem:[%s1 + $0x38] sm:$0xff]
    %v53 = vld [vmem:[%s2] sm:$0xff]
    %v54 = vld [vmem:[%s2 + $0x8] sm:$0xff]
    %v55 = vld [vmem:[%s2 + $0x10] sm:$0xff]
    %v56 = vld [vmem:[%s2 + $0x18] sm:$0xff]
    %v57 = vld [vmem:[%s2 + $0x20] sm:$0xff]
    %v58 = vld [vmem:[%s2 + $0x28] sm:$0xff]
    %v59 = vld [vmem:[%s2 + $0x30] sm:$0xff]
    %v60 = vld [vmem:[%s2 + $0x38] sm:$0xff]
    %62 = vset.pattern.permute.xlu0 0
    %63 = vperm.xlu0 %62, %v53
    %v64 = vpop.permute.xlu0 %63
    %67 = vset.pattern.permute.xlu0 0
    %68 = vperm.xlu0 %67, %v54
    %v69 = vpop.permute.xlu0 %68
    %72 = vset.pattern.permute.xlu0 0
    %73 = vperm.xlu0 %72, %v55
    %v74 = vpop.permute.xlu0 %73
    %77 = vset.pattern.permute.xlu0 0
    %78 = vperm.xlu0 %77, %v56
    %v79 = vpop.permute.xlu0 %78
    %82 = vset.pattern.permute.xlu0 0
    %83 = vperm.xlu0 %82, %v57
    %v84 = vpop.permute.xlu0 %83
    %87 = vset.pattern.permute.xlu0 0
    %88 = vperm.xlu0 %87, %v58
    %v89 = vpop.permute.xlu0 %88
    %92 = vset.pattern.permute.xlu0 0
    %93 = vperm.xlu0 %92, %v59
    %v94 = vpop.permute.xlu0 %93
    %97 = vset.pattern.permute.xlu0 0
    %98 = vperm.xlu0 %97, %v60
    %v99 = vpop.permute.xlu0 %98
    %vm101 = vcmask 261120
    %v103 = vsel %vm101, %v45, 0
    %v106 = vsel %vm101, %v46, 0
    %v109 = vsel %vm101, %v47, 0
    %v112 = vsel %vm101, %v48, 0
    %v115 = vsel %vm101, %v49, 0
    %v118 = vsel %vm101, %v50, 0
    %v121 = vsel %vm101, %v51, 0
    %v124 = vsel %vm101, %v52, 0
    %v127 = vsel %vm101, %v29, 0
    %v130 = vsel %vm101, %v30, 0
    %v133 = vsel %vm101, %v31, 0
    %v136 = vsel %vm101, %v32, 0
    %v139 = vsel %vm101, %v33, 0
    %v142 = vsel %vm101, %v34, 0
    %v145 = vsel %vm101, %v35, 0
    %v148 = vsel %vm101, %v36, 0
    %v151 = vsel %vm101, %v37, 0
    %v154 = vsel %vm101, %v38, 0
    %v157 = vsel %vm101, %v39, 0
    %v160 = vsel %vm101, %v40, 0
    %v163 = vsel %vm101, %v41, 0
    %v166 = vsel %vm101, %v42, 0
    %v169 = vsel %vm101, %v43, 0
    %v172 = vsel %vm101, %v44, 0
    %174 = vmatprep.subr.mxu0 0.0
    %175 = vmatpush1.xpose.msra.mxu0 %v127
    %176 = vmatprep.subr.mxu0 0.0
    %177 = vmatpush1.xpose.msra.mxu0 %v130
    %178 = vmatprep.subr.mxu0 0.0
    %179 = vmatpush1.xpose.msra.mxu0 %v133
    %180 = vmatprep.subr.mxu0 0.0
    %181 = vmatpush1.xpose.msra.mxu0 %v136
    %182 = vmatprep.subr.mxu0 0.0
    %183 = vmatpush1.xpose.msra.mxu0 %v139
    %184 = vmatprep.subr.mxu0 0.0
    %185 = vmatpush1.xpose.msra.mxu0 %v142
    %186 = vmatprep.subr.mxu0 0.0
    %187 = vmatpush1.xpose.msra.mxu0 %v145
    %188 = vmatprep.subr.mxu0 0.0
    %189 = vmatpush1.xpose.msra.mxu0 %v148
    %190 = vmatprep.subr.mxu0 0.0
    %191 = vmatpush1.xpose.msra.mxu0 %v151
    %192 = vmatprep.subr.mxu0 0.0
    %193 = vmatpush1.xpose.msra.mxu0 %v154
    %194 = vmatprep.subr.mxu0 0.0
    %195 = vmatpush1.xpose.msra.mxu0 %v157
    %196 = vmatprep.subr.mxu0 0.0
    %197 = vmatpush1.xpose.msra.mxu0 %v160
    %198 = vmatprep.subr.mxu0 0.0
    %199 = vmatpush1.xpose.msra.mxu0 %v163
    %200 = vmatprep.subr.mxu0 0.0
    %201 = vmatpush1.xpose.msra.mxu0 %v166
    %202 = vmatprep.subr.mxu0 0.0
    %203 = vmatpush1.xpose.msra.mxu0 %v169
    %204 = vmatprep.subr.mxu0 0.0
    %205 = vmatpush1.xpose.msra.mxu0 %v172
    %206 = vmatprep.subr.mxu0 0.0
    %207 = vmatpush1.xpose.msra.mxu0 0.0
    %208 = vmatprep.subr.mxu0 0.0
    %209 = vmatpush1.xpose.msra.mxu0 0.0
    %210 = vmatprep.subr.mxu0 0.0
    %211 = vmatpush1.xpose.msra.mxu0 0.0
    %212 = vmatprep.subr.mxu0 0.0
    %213 = vmatpush1.xpose.msra.mxu0 0.0
    %214 = vmatprep.subr.mxu0 0.0
    %215 = vmatpush1.xpose.msra.mxu0 0.0
    %216 = vmatprep.subr.mxu0 0.0
    %217 = vmatpush1.xpose.msra.mxu0 0.0
    %218 = vmatprep.subr.mxu0 0.0
    %219 = vmatpush1.xpose.msra.mxu0 0.0
    %220 = vmatprep.subr.mxu0 0.0
    %221 = vmatpush1.xpose.msra.mxu0 0.0
    %222 = vmatprep.subr.mxu0 0.0
    %223 = vmatpush1.xpose.msra.mxu0 0.0
    %224 = vmatprep.subr.mxu0 0.0
    %225 = vmatpush1.xpose.msra.mxu0 0.0
    %226 = vmatprep.subr.mxu0 0.0
    %227 = vmatpush1.xpose.msra.mxu0 0.0
    %228 = vmatprep.subr.mxu0 0.0
    %229 = vmatpush1.xpose.msra.mxu0 0.0
    %230 = vmatprep.subr.mxu0 0.0
    %231 = vmatpush1.xpose.msra.mxu0 0.0
    %232 = vmatprep.subr.mxu0 0.0
    %233 = vmatpush1.xpose.msra.mxu0 0.0
    %234 = vmatprep.subr.mxu0 0.0
    %235 = vmatpush1.xpose.msra.mxu0 0.0
    %236 = vmatprep.subr.mxu0 0.0
    %237 = vmatpush1.xpose.msra.mxu0 0.0
    %238 = vmatprep.mubr.f32.mxu0 0.0
    %239 = vmatmul.mubr.f32.gmra.mrb[0].mxu0 %v103
    %v240 = vpop.f32.mrb[0].mxu0
    %v241 = vadd.f32 %v64, %v240
    %v242 = vpop.f32.mrb[0].mxu0
    %243 = vmatprep.mubr.f32.mxu0 0.0
    %244 = vmatmul.mubr.f32.gmra.mrb[0].mxu0 %v106
    %v245 = vpop.f32.mrb[0].mxu0
    %v246 = vadd.f32 %v69, %v245
    %v247 = vpop.f32.mrb[0].mxu0
    %248 = vmatprep.mubr.f32.mxu0 0.0
    %249 = vmatmul.mubr.f32.gmra.mrb[0].mxu0 %v109
    %v250 = vpop.f32.mrb[0].mxu0
    %v251 = vadd.f32 %v74, %v250
    %v252 = vpop.f32.mrb[0].mxu0
    %253 = vmatprep.mubr.f32.mxu0 0.0
    %254 = vmatmul.mubr.f32.gmra.mrb[0].mxu0 %v112
    %v255 = vpop.f32.mrb[0].mxu0
    %v256 = vadd.f32 %v79, %v255
    %v257 = vpop.f32.mrb[0].mxu0
    %258 = vmatprep.mubr.f32.mxu0 0.0
    %259 = vmatmul.mubr.f32.gmra.mrb[0].mxu0 %v115
    %v260 = vpop.f32.mrb[0].mxu0
    %v261 = vadd.f32 %v84, %v260
    %v262 = vpop.f32.mrb[0].mxu0
    %263 = vmatprep.mubr.f32.mxu0 0.0
    %264 = vmatmul.mubr.f32.gmra.mrb[0].mxu0 %v118
    %v265 = vpop.f32.mrb[0].mxu0
    %v266 = vadd.f32 %v89, %v265
    %v267 = vpop.f32.mrb[0].mxu0
    %268 = vmatprep.mubr.f32.mxu0 0.0
    %269 = vmatmul.mubr.f32.gmra.mrb[0].mxu0 %v121
    %v270 = vpop.f32.mrb[0].mxu0
    %v271 = vadd.f32 %v94, %v270
    %v272 = vpop.f32.mrb[0].mxu0
    %273 = vmatprep.mubr.f32.mxu0 0.0
    %274 = vmatmul.mubr.f32.gmra.mrb[0].mxu0 %v124
    %v275 = vpop.f32.mrb[0].mxu0
    %v276 = vadd.f32 %v99, %v275
    %v277 = vpop.f32.mrb[0].mxu0
    %278 = vdwg.mxu0
    %vm279 = vcmp.gt.f32.partialorder %v241, 0.0
    %vm280 = vcmp.gt.f32.partialorder %v246, 0.0
    %vm281 = vcmp.gt.f32.partialorder %v251, 0.0
    %vm282 = vcmp.gt.f32.partialorder %v256, 0.0
    %vm283 = vcmp.gt.f32.partialorder %v261, 0.0
    %vm284 = vcmp.gt.f32.partialorder %v266, 0.0
    %vm285 = vcmp.gt.f32.partialorder %v271, 0.0
    %vm286 = vcmp.gt.f32.partialorder %v276, 0.0
    %v287 = vmul.f32 %v241, 0.2
    %v288 = vmul.f32 %v246, 0.2
    %v289 = vmul.f32 %v251, 0.2
    %v290 = vmul.f32 %v256, 0.2
    %v291 = vmul.f32 %v261, 0.2
    %v292 = vmul.f32 %v266, 0.2
    %v293 = vmul.f32 %v271, 0.2
    %v294 = vmul.f32 %v276, 0.2
    %v295 = vsel %vm279, %v241, %v287
    %v296 = vsel %vm280, %v246, %v288
    %v297 = vsel %vm281, %v251, %v289
    %v298 = vsel %vm282, %v256, %v290
    %v299 = vsel %vm283, %v261, %v291
    %v300 = vsel %vm284, %v266, %v292
    %v301 = vsel %vm285, %v271, %v293
    %v302 = vsel %vm286, %v276, %v294
    %v303 = vld [vmem:[%s3] sm:$0xff]
    %v304 = vld [vmem:[%s3 + $0x8] sm:$0xff]
    %v305 = vld [vmem:[%s3 + $0x10] sm:$0xff]
    %v306 = vld [vmem:[%s3 + $0x18] sm:$0xff]
    %v307 = vld [vmem:[%s4] sm:$0xff]
    %v308 = vld [vmem:[%s4 + $0x8] sm:$0xff]
    %v309 = vld [vmem:[%s4 + $0x10] sm:$0xff]
    %v310 = vld [vmem:[%s4 + $0x18] sm:$0xff]
    %312 = vset.pattern.permute.xlu0 0
    %313 = vperm.xlu0 %312, %v307
    %v314 = vpop.permute.xlu0 %313
    %317 = vset.pattern.permute.xlu0 0
    %318 = vperm.xlu0 %317, %v308
    %v319 = vpop.permute.xlu0 %318
    %322 = vset.pattern.permute.xlu0 0
    %323 = vperm.xlu0 %322, %v309
    %v324 = vpop.permute.xlu0 %323
    %327 = vset.pattern.permute.xlu0 0
    %328 = vperm.xlu0 %327, %v310
    %v329 = vpop.permute.xlu0 %328
    %vm331 = vcmask 523264
    %v333 = vsel %vm331, %v303, 0
    %v336 = vsel %vm331, %v304, 0
    %v339 = vsel %vm331, %v305, 0
    %v342 = vsel %vm331, %v306, 0
    %344 = vmatprep.subr.mxu0 0.0
    %345 = vmatpush1.msra.mxu0 %v295
    %346 = vmatprep.subr.mxu0 0.0
    %347 = vmatpush1.msra.mxu0 %v296
    %348 = vmatprep.subr.mxu0 0.0
    %349 = vmatpush1.msra.mxu0 %v297
    %350 = vmatprep.subr.mxu0 0.0
    %351 = vmatpush1.msra.mxu0 %v298
    %352 = vmatprep.subr.mxu0 0.0
    %353 = vmatpush1.msra.mxu0 %v299
    %354 = vmatprep.subr.mxu0 0.0
    %355 = vmatpush1.msra.mxu0 %v300
    %356 = vmatprep.subr.mxu0 0.0
    %357 = vmatpush1.msra.mxu0 %v301
    %358 = vmatprep.subr.mxu0 0.0
    %359 = vmatpush1.msra.mxu0 %v302
    %360 = vmatprep.subr.mxu0 0.0
    %361 = vmatpush1.msra.mxu0 0.0
    %362 = vmatprep.subr.mxu0 0.0
    %363 = vmatpush1.msra.mxu0 0.0
    %364 = vmatprep.subr.mxu0 0.0
    %365 = vmatpush1.msra.mxu0 0.0
    %366 = vmatprep.subr.mxu0 0.0
    %367 = vmatpush1.msra.mxu0 0.0
    %368 = vmatprep.subr.mxu0 0.0
    %369 = vmatpush1.msra.mxu0 0.0
    %370 = vmatprep.subr.mxu0 0.0
    %371 = vmatpush1.msra.mxu0 0.0
    %372 = vmatprep.subr.mxu0 0.0
    %373 = vmatpush1.msra.mxu0 0.0
    %374 = vmatprep.subr.mxu0 0.0
    %375 = vmatpush1.msra.mxu0 0.0
    %376 = vmatprep.subr.mxu0 0.0
    %377 = vmatpush1.msra.mxu0 0.0
    %378 = vmatprep.subr.mxu0 0.0
    %379 = vmatpush1.msra.mxu0 0.0
    %380 = vmatprep.subr.mxu0 0.0
    %381 = vmatpush1.msra.mxu0 0.0
    %382 = vmatprep.subr.mxu0 0.0
    %383 = vmatpush1.msra.mxu0 0.0
    %384 = vmatprep.subr.mxu0 0.0
    %385 = vmatpush1.msra.mxu0 0.0
    %386 = vmatprep.subr.mxu0 0.0
    %387 = vmatpush1.msra.mxu0 0.0
    %388 = vmatprep.subr.mxu0 0.0
    %389 = vmatpush1.msra.mxu0 0.0
    %390 = vmatprep.subr.mxu0 0.0
    %391 = vmatpush1.msra.mxu0 0.0
    %392 = vmatprep.subr.mxu0 0.0
    %393 = vmatpush1.msra.mxu0 0.0
    %394 = vmatprep.subr.mxu0 0.0
    %395 = vmatpush1.msra.mxu0 0.0
    %396 = vmatprep.subr.mxu0 0.0
    %397 = vmatpush1.msra.mxu0 0.0
    %398 = vmatprep.subr.mxu0 0.0
    %399 = vmatpush1.msra.mxu0 0.0
    %400 = vmatprep.subr.mxu0 0.0
    %401 = vmatpush1.msra.mxu0 0.0
    %402 = vmatprep.subr.mxu0 0.0
    %403 = vmatpush1.msra.mxu0 0.0
    %404 = vmatprep.subr.mxu0 0.0
    %405 = vmatpush1.msra.mxu0 0.0
    %406 = vmatprep.subr.mxu0 0.0
    %407 = vmatpush1.msra.mxu0 0.0
    %408 = vmatprep.mubr.f32.mxu0 0.0
    %409 = vmatmul.mubr.f32.gmra.mrb[0].mxu0 %v333
    %v410 = vpop.f32.mrb[0].mxu0
    %v411 = vadd.f32 %v314, %v410
    %v412 = vpop.f32.mrb[0].mxu0
    %413 = vmatprep.mubr.f32.mxu0 0.0
    %414 = vmatmul.mubr.f32.gmra.mrb[0].mxu0 %v336
    %v415 = vpop.f32.mrb[0].mxu0
    %v416 = vadd.f32 %v319, %v415
    %v417 = vpop.f32.mrb[0].mxu0
    %418 = vmatprep.mubr.f32.mxu0 0.0
    %419 = vmatmul.mubr.f32.gmra.mrb[0].mxu0 %v339
    %v420 = vpop.f32.mrb[0].mxu0
    %v421 = vadd.f32 %v324, %v420
    %v422 = vpop.f32.mrb[0].mxu0
    %423 = vmatprep.mubr.f32.mxu0 0.0
    %424 = vmatmul.mubr.f32.gmra.mrb[0].mxu0 %v342
    %v425 = vpop.f32.mrb[0].mxu0
    %v426 = vadd.f32 %v329, %v425
    %v427 = vpop.f32.mrb[0].mxu0
    %428 = vdwg.mxu0
    %vm429 = vcmp.gt.f32.partialorder %v411, 0.0
    %vm430 = vcmp.gt.f32.partialorder %v416, 0.0
    %vm431 = vcmp.gt.f32.partialorder %v421, 0.0
    %vm432 = vcmp.gt.f32.partialorder %v426, 0.0
    %v433 = vmul.f32 %v411, 0.2
    %v434 = vmul.f32 %v416, 0.2
    %v435 = vmul.f32 %v421, 0.2
    %v436 = vmul.f32 %v426, 0.2
    %v437 = vsel %vm429, %v411, %v433
    %v438 = vsel %vm430, %v416, %v434
    %v439 = vsel %vm431, %v421, %v435
    %v440 = vsel %vm432, %v426, %v436
    %v441 = vld [vmem:[%s5] sm:$0xff]
    %v442 = vld [vmem:[%s5 + $0x8] sm:$0xff]
    %v443 = vld [vmem:[%s5 + $0x10] sm:$0xff]
    %v444 = vld [vmem:[%s5 + $0x18] sm:$0xff]
    %v445 = vld [vmem:[#allocation2] sm:$0x1]
    %447 = vset.pattern.permute.xlu0 0
    %448 = vperm.xlu0 %447, %v441
    %v449 = vpop.permute.xlu0 %448
    %452 = vset.pattern.permute.xlu0 0
    %453 = vperm.xlu0 %452, %v442
    %v454 = vpop.permute.xlu0 %453
    %457 = vset.pattern.permute.xlu0 0
    %458 = vperm.xlu0 %457, %v443
    %v459 = vpop.permute.xlu0 %458
    %462 = vset.pattern.permute.xlu0 0
    %463 = vperm.xlu0 %462, %v444
    %v464 = vpop.permute.xlu0 %463
    %v466 = vmul.f32 %v437, %v449
    %v467 = vmul.f32 %v438, %v454
    %v468 = vmul.f32 %v439, %v459
    %v469 = vmul.f32 %v440, %v464
    %v470 = vadd.f32 %v466, %v467
    %v471 = vadd.f32 %v470, %v468
    %v472 = vadd.f32 %v471, %v469
    %v473 = vrot.slane %v472, 4
    %v474 = vadd.f32 %v472, %v473
    %v475 = vrot.slane %v474, 2
    %v476 = vadd.f32 %v474, %v475
    %v477 = vrot.slane %v476, 1
    %v478 = vadd.f32 %v476, %v477
    %480 = vset.pattern.permute.xlu0 0
    %481 = vperm.xlu0 %480, %v445
    %v482 = vpop.permute.xlu0 %481
    %v484 = vlaneseq
    %v485 = vshrl.u32 %v484, 7
    %v486 = vsub.s32 0, %v485
    %v487 = vrot.slane %v482, %v486
    %v488 = vadd.f32 %v478, %v487
    %v489 = vsub.f32 0.0, %v488
    %v490 = vmul.f32 %v489, 1.442695
    %v491 = vpow.pop %v490
    %v492 = vadd.f32 %v491, 1.0
    %v493 = vrcp.pop %v492
    %v494 = vmul.f32 1.0, %v493
    %495 = vst [vmem:[#allocation3] sm:$0x1] %v494
    // Predicated region
    $region30: #{tpu_custom_call.1} parent=1 // pred_check
      _
    $region31: #{tpu_custom_call.1} parent=1 // pred_check_branch
      %497 = sbr.rel (0) target = $region33
    $region32: #{tpu_custom_call.1} parent=1 // pred_region
      %s499 = ssub.s32 16, 16
      %500 = vsyncadd [#allocation4], %s499
      %s502 = sshll.u32 [#allocation3], 4
      %s503 = int_to_ptr.vmem [resolvable:$true] %s502
      %505 = dma.vmem_to_hbm [thread:$0]  %s503, 16, %s7, [#allocation4]
    $region33: #{tpu_custom_call.1} parent=1 // pred_fallthru
      _
    // Predicated region
    $region34: #{tpu_custom_call.1} parent=1 // pred_check
      _
    $region35: #{tpu_custom_call.1} parent=1 // pred_check_branch
      %507 = sbr.rel (0) target = $region37
    $region36: #{tpu_custom_call.1} parent=1 // pred_region
      %508 = dma.done [#allocation4], 16
    $region37: #{tpu_custom_call.1} parent=1 // pred_fallthru
      _
    %509 = vsyncpa [#allocation4], 1

</llo_original>
